<compile_context>
chip_gen: v7x
topology: tpu7x:2x2x1
jax: 0.10.0
libtpu: 0.0.40
codegen_flags: <defaults>
</compile_context>

<pallas_src>
import functools

import jax
import jax.numpy as jnp
import numpy as np
from jax.experimental import pallas as pl
from jax.experimental.pallas import tpu as pltpu

_LANE = 128


def _fft_real_kernel(cos_ref, x_ref, o_ref, *, precision):
    # cos_ref: (H, H) cosine DFT matrix (constant index_map -> fetched once).
    # x_ref:   (H, TN) lane-dense slab of (b, c, w) columns.
    # Single MXU matmul; write directly into the output block (both f32).
    o_ref[...] = jnp.dot(
        cos_ref[...],
        x_ref[...],
        preferred_element_type=jnp.float32,
        precision=precision,
    )


def _pick_tn(H, n_ceil, vmem_budget_bytes=24 * 1024 * 1024):
    """Largest lane-dense column tile (multiple of 128) fitting the VMEM budget.

    Pipelined VMEM per step: x tile + out tile, each double-buffered, f32
    (= 16 * H * TN bytes), plus the double-buffered cosine matrix (2*H*H*4 B).
    Budget is kept well under the 32 MiB default scoped limit so the kernel is
    safe on v7x's 64 MiB physical VMEM without raising vmem_limit_bytes.
    """
    avail = vmem_budget_bytes - 2 * H * H * 4
    tn_cap = max(_LANE, (avail // (16 * H)) // _LANE * _LANE)
    tn_cap = min(tn_cap, 2048)  # keep per-step DMAs / latency reasonable
    return int(min(tn_cap, n_ceil))


def fourier_transform(x):
    """Pallas implementation of FourierTransform.forward for NCHW input.

    Returns float32 array of the same shape: real part of FFT along dim=-2 (H).
    """
    B, C, H, W = x.shape
    N = B * C * W

    # Lane-dense layout: contract H on the sublane axis, put all (b, c, w)
    # columns on the lane axis -> a single [H, H] @ [H, N] matmul.
    x2 = jnp.transpose(x, (2, 0, 1, 3)).reshape(H, N).astype(jnp.float32)

    n_ceil = -(-N // _LANE) * _LANE
    TN = _pick_tn(H, n_ceil)
    n_pad = -(-N // TN) * TN
    if n_pad != N:
        x2 = jnp.pad(x2, ((0, 0), (0, n_pad - N)))

    # Cosine DFT matrix: cos(2*pi*((k*h) mod H)/H), built on host in float64 so
    # the angle stays accurate even for large H (k*h up to H^2 overflows f32
    # angle precision otherwise).
    kk = np.arange(H, dtype=np.int64)
    kh = (kk[:, None] * kk[None, :]) % H
    cos_mat = jnp.asarray(
        np.cos(2.0 * np.pi * kh.astype(np.float64) / H).astype(np.float32)
    )

    # Arithmetic intensity ~ H/4 flop/byte => HBM-bound for moderate H, where
    # HIGHEST-precision f32 MXU passes are hidden behind the DMA; relax only
    # for very large H where the kernel approaches compute-bound.
    precision = (
        jax.lax.Precision.HIGHEST if H <= 1024 else jax.lax.Precision.DEFAULT
    )

    grid = (n_pad // TN,)
    cost = pl.CostEstimate(
        flops=2 * H * H * n_pad,
        transcendentals=0,
        bytes_accessed=H * H * 4 + 2 * H * n_pad * 4,
    )

    out2 = pl.pallas_call(
        functools.partial(_fft_real_kernel, precision=precision),
        out_shape=jax.ShapeDtypeStruct((H, n_pad), jnp.float32),
        grid_spec=pltpu.PrefetchScalarGridSpec(
            num_scalar_prefetch=0,
            grid=grid,
            in_specs=[
                # Constant index_map: cosine matrix is DMA'd once and reused
                # across every grid step.
                pl.BlockSpec((H, H), lambda j: (0, 0)),
                pl.BlockSpec((H, TN), lambda j: (0, j)),
            ],
            out_specs=pl.BlockSpec((H, TN), lambda j: (0, j)),
        ),
        compiler_params=pltpu.CompilerParams(
            dimension_semantics=("parallel",),  # megacore-shardable on v7x
        ),
        cost_estimate=cost,
    )(cos_mat, x2)

    # Drop padding columns and restore NCHW.
    out = out2[:, :N].reshape(H, B, C, W)
    return jnp.transpose(out, (1, 2, 0, 3))


if __name__ == "__main__":
    key = jax.random.PRNGKey(0)
    B, C, H, W = 2, 4, 16, 16
    x = jax.random.normal(key, (B, C, H, W), dtype=jnp.float32)

    y = fourier_transform(x)
    y = jax.block_until_ready(y)

    # Reference: real part of FFT along dim=-2 (matches PyTorch .to(float32)).
    y_ref = jnp.real(
        jnp.fft.fftn(x.astype(jnp.complex64), axes=(-2,))
    ).astype(jnp.float32)

    assert y.shape == (B, C, H, W) and y.dtype == jnp.float32
    np.testing.assert_allclose(np.asarray(y), np.asarray(y_ref), atol=1e-3, rtol=1e-3)

    print("KERNEL_OK")
</pallas_src>

<mosaic_0001>
module attributes {stable_mosaic.version = 11 : i64} {
  func.func @_fft_real_kernel(%arg0: i32, %arg1: memref<16x16xf32, #tpu.memory_space<vmem>>, %arg2: memref<16x128xf32, #tpu.memory_space<vmem>>, %arg3: memref<16x128xf32, #tpu.memory_space<vmem>>) attributes {dimension_semantics = [#tpu.dimension_semantics<parallel>], iteration_bounds = array<i64: 1>, scalar_prefetch = 0 : i64, scratch_operands = 0 : i64, tpu.core_type = #tpu.core_type<tc>, window_params = [{pipeline_mode = #tpu.pipeline_mode<synchronous>, transform_indices = @transform_0, window_bounds = array<i64: 16, 16>}, {transform_indices = @transform_1, window_bounds = array<i64: 16, 128>}, {transform_indices = @transform_2, window_bounds = array<i64: 16, 128>}]} {
    %c0 = arith.constant 0 : index
    %c0_0 = arith.constant 0 : index
    %0 = vector.load %arg1[%c0, %c0_0] : memref<16x16xf32, #tpu.memory_space<vmem>>, vector<16x16xf32>
    %c0_1 = arith.constant 0 : index
    %c0_2 = arith.constant 0 : index
    %1 = vector.load %arg2[%c0_1, %c0_2] : memref<16x128xf32, #tpu.memory_space<vmem>>, vector<16x128xf32>
    %cst = arith.constant dense<0.000000e+00> : vector<16x128xf32>
    %2 = tpu.matmul %0, %1, %cst {dimension_numbers = #tpu.dot_dimension_numbers<[1], [0], [0], [1], [0, 0, 1, 1], [], []>, precision = #tpu.contract_precision<fp32>} : vector<16x16xf32>, vector<16x128xf32>, vector<16x128xf32> -> vector<16x128xf32>
    %c0_3 = arith.constant 0 : index
    %c0_4 = arith.constant 0 : index
    %3 = vector.load %arg3[%c0_3, %c0_4] : memref<16x128xf32, #tpu.memory_space<vmem>>, vector<16x128xf32>
    tpu.vector_store %arg3[%c0_3, %c0_4], %2 {strides = array<i32>} : memref<16x128xf32, #tpu.memory_space<vmem>>, vector<16x128xf32>,
    return
  }
  func.func @transform_0(%arg0: i32) -> (i32, i32) {
    %c0_i32 = arith.constant 0 : i32
    %c0_i32_0 = arith.constant 0 : i32
    %c0_i32_1 = arith.constant 0 : i32
    return %c0_i32, %c0_i32_0 : i32, i32
  }
  func.func @transform_1(%arg0: i32) -> (i32, i32) {
    %c0_i32 = arith.constant 0 : i32
    %c0_i32_0 = arith.constant 0 : i32
    return %c0_i32, %arg0 : i32, i32
  }
  func.func @transform_2(%arg0: i32) -> (i32, i32) {
    %c0_i32 = arith.constant 0 : i32
    %c0_i32_0 = arith.constant 0 : i32
    return %c0_i32, %arg0 : i32, i32
  }
}

</mosaic_0001>

<llo_original>
// kernel: tpu_custom_call.1
$region0: #{tpu_custom_call.1}
  #allocation0 [shape = 'u32[]', space=smem, size = 0x4, offset = 0x4, fixed_abs, tag = 'smem constant byte address 0x4 - core index']
  #allocation1 [shape = 'u32[144,128]{1,0:T(1,128)}', space=vmem, size = 0x12000, scoped, tag = 'internal scratch']
  %s0 = inlined_call_operand.hbm [shape: f32[16,16], index: 0, kind: input, shape index: {}]
  %s1 = inlined_call_operand.hbm [shape: f32[16,128], index: 1, kind: input, shape index: {}]
  %s2 = inlined_call_operand.hbm [shape: f32[16,128], index: 2, kind: output, shape index: {}]
  %s3 = sld [smem:[#allocation0]]
  $region26: #{tpu_custom_call.1} parent=0
    _
  %s5 = ssub.s32 1, %s3
  %s6 = scalar_select 0, %s5, %s3
  $region1: #{tpu_custom_call.1} parent=0
    #allocation2 [shape = 'u8[8192]{0}', space=vmem, size = 0x2000, scoped, tag = 'input window, operand 0, single buffered']
    #allocation3 [shape = 's32[1]{0}', space=sflag, size = 0x4, scoped, tag = 'scoped memory for tpu_custom_call.1']
    #allocation4 [shape = 's32[1]{0}', space=sflag, size = 0x4, scoped, tag = 'scoped memory for tpu_custom_call.1']
    #allocation5 [shape = 'u8[8192]{0}', space=vmem, size = 0x2000, scoped, tag = 'input window, operand 1, single buffered']
    #allocation6 [shape = 's32[1]{0}', space=sflag, size = 0x4, scoped, tag = 'scoped memory for tpu_custom_call.1']
    #allocation7 [shape = 'u8[8192]{0}', space=vmem, size = 0x2000, scoped, tag = 'output window, operand 0, single buffered']
    %7 = vsyncpa [#allocation3], 0
    %8 = vsyncpa [#allocation6], 0
    %9 = vsyncpa [#allocation4], 0
    // Predicated region
    $region2: #{tpu_custom_call.1} parent=1 // pred_check
      _
    $region3: #{tpu_custom_call.1} parent=1 // pred_check_branch
      %11 = sbr.rel (0) target = $region5
    $region4: #{tpu_custom_call.1} parent=1 // pred_region
      %s13 = ssub.s32 256, 256
      %14 = vsyncadd [#allocation3], %s13
      %s15 = sshll.u32 [#allocation2], 4
      %s16 = int_to_ptr.vmem [resolvable:$true] %s15
      %21 = dma.hbm_to_vmem [thread:$0]  %s0, 256, %s16, [#allocation3], 128, 128, 8
    $region5: #{tpu_custom_call.1} parent=1 // pred_fallthru
      _
    // Predicated region
    $region6: #{tpu_custom_call.1} parent=1 // pred_check
      _
    $region7: #{tpu_custom_call.1} parent=1 // pred_check_branch
      %23 = sbr.rel (0) target = $region9
    $region8: #{tpu_custom_call.1} parent=1 // pred_region
      %s25 = ssub.s32 256, 256
      %26 = vsyncadd [#allocation6], %s25
      %s27 = sshll.u32 [#allocation5], 4
      %s28 = int_to_ptr.vmem [resolvable:$true] %s27
      %33 = dma.hbm_to_vmem [thread:$0]  %s1, 256, %s28, [#allocation6], 128, 128, 8
    $region9: #{tpu_custom_call.1} parent=1 // pred_fallthru
      _
    // Predicated region
    $region10: #{tpu_custom_call.1} parent=1 // pred_check
      _
    $region11: #{tpu_custom_call.1} parent=1 // pred_check_branch
      %35 = sbr.rel (0) target = $region13
    $region12: #{tpu_custom_call.1} parent=1 // pred_region
      %36 = dma.done [#allocation3], 256
    $region13: #{tpu_custom_call.1} parent=1 // pred_fallthru
      _
    // Predicated region
    $region14: #{tpu_custom_call.1} parent=1 // pred_check
      _
    $region15: #{tpu_custom_call.1} parent=1 // pred_check_branch
      %38 = sbr.rel (0) target = $region17
    $region16: #{tpu_custom_call.1} parent=1 // pred_region
      %39 = dma.done [#allocation6], 256
    $region17: #{tpu_custom_call.1} parent=1 // pred_fallthru
      _
    %v40 = vld [vmem:[#allocation2] sm:$0xff]
    %v41 = vld [vmem:[#allocation2 + $0x8] sm:$0xff]
    %v42 = vld [vmem:[#allocation5] sm:$0xff]
    %v43 = vld [vmem:[#allocation5 + $0x8] sm:$0xff]
    %vm44 = vcmask 130048
    %v46 = vsel %vm44, %v40, 0
    %v49 = vsel %vm44, %v41, 0
    %51 = vmatprep.subr.mxu0 0.0
    %v52 = vand.u32 %v42, 4294901760
    %53 = vmatpush1.msra.mxu0 %v52
    %54 = vmatprep.subr.mxu0 0.0
    %v55 = vand.u32 %v43, 4294901760
    %56 = vmatpush1.msra.mxu0 %v55
    %57 = vmatprep.subr.mxu0 0.0
    %58 = vmatpush1.msra.mxu0 0.0
    %59 = vmatprep.subr.mxu0 0.0
    %60 = vmatpush1.msra.mxu0 0.0
    %61 = vmatprep.subr.mxu0 0.0
    %62 = vmatpush1.msra.mxu0 0.0
    %63 = vmatprep.subr.mxu0 0.0
    %64 = vmatpush1.msra.mxu0 0.0
    %65 = vmatprep.subr.mxu0 0.0
    %66 = vmatpush1.msra.mxu0 0.0
    %67 = vmatprep.subr.mxu0 0.0
    %68 = vmatpush1.msra.mxu0 0.0
    %69 = vmatprep.subr.mxu0 0.0
    %70 = vmatpush1.msra.mxu0 0.0
    %71 = vmatprep.subr.mxu0 0.0
    %72 = vmatpush1.msra.mxu0 0.0
    %73 = vmatprep.subr.mxu0 0.0
    %74 = vmatpush1.msra.mxu0 0.0
    %75 = vmatprep.subr.mxu0 0.0
    %76 = vmatpush1.msra.mxu0 0.0
    %77 = vmatprep.subr.mxu0 0.0
    %78 = vmatpush1.msra.mxu0 0.0
    %79 = vmatprep.subr.mxu0 0.0
    %80 = vmatpush1.msra.mxu0 0.0
    %81 = vmatprep.subr.mxu0 0.0
    %82 = vmatpush1.msra.mxu0 0.0
    %83 = vmatprep.subr.mxu0 0.0
    %84 = vmatpush1.msra.mxu0 0.0
    %85 = vmatprep.subr.mxu0 0.0
    %86 = vmatpush1.msra.mxu0 0.0
    %87 = vmatprep.subr.mxu0 0.0
    %88 = vmatpush1.msra.mxu0 0.0
    %89 = vmatprep.subr.mxu0 0.0
    %90 = vmatpush1.msra.mxu0 0.0
    %91 = vmatprep.subr.mxu0 0.0
    %92 = vmatpush1.msra.mxu0 0.0
    %93 = vmatprep.subr.mxu0 0.0
    %94 = vmatpush1.msra.mxu0 0.0
    %95 = vmatprep.subr.mxu0 0.0
    %96 = vmatpush1.msra.mxu0 0.0
    %97 = vmatprep.subr.mxu0 0.0
    %98 = vmatpush1.msra.mxu0 0.0
    %99 = vmatprep.subr.mxu0 0.0
    %100 = vmatpush1.msra.mxu0 0.0
    %101 = vmatprep.subr.mxu0 0.0
    %102 = vmatpush1.msra.mxu0 0.0
    %103 = vmatprep.subr.mxu0 0.0
    %104 = vmatpush1.msra.mxu0 0.0
    %105 = vmatprep.subr.mxu0 0.0
    %106 = vmatpush1.msra.mxu0 0.0
    %107 = vmatprep.subr.mxu0 0.0
    %108 = vmatpush1.msra.mxu0 0.0
    %109 = vmatprep.subr.mxu0 0.0
    %110 = vmatpush1.msra.mxu0 0.0
    %111 = vmatprep.subr.mxu0 0.0
    %112 = vmatpush1.msra.mxu0 0.0
    %113 = vmatprep.subr.mxu0 0.0
    %114 = vmatpush1.msra.mxu0 0.0
    %115 = vmatprep.subr.mxu0 0.0
    %116 = vmatpush1.msra.mxu0 0.0
    %117 = vmatprep.mubr.f32.mxu0 0.0
    %v118 = vand.u32 %v46, 4294901760
    %v119 = vsub.f32 %v46, %v118
    %v120 = vand.u32 %v119, 4294901760
    %v121 = vsub.f32 %v119, %v120
    %v122 = vand.u32 %v121, 4294901760
    %123 = vmatmul.mubr.f32.gmra.mrb[0].mxu0 %v122
    %v124 = vpop.f32.mrb[0].mxu0
    %v125 = vadd.f32 0.0, %v124
    %v126 = vpop.f32.mrb[0].mxu0
    %127 = vmatprep.mubr.f32.mxu0 0.0
    %v128 = vand.u32 %v49, 4294901760
    %v129 = vsub.f32 %v49, %v128
    %v130 = vand.u32 %v129, 4294901760
    %v131 = vsub.f32 %v129, %v130
    %v132 = vand.u32 %v131, 4294901760
    %133 = vmatmul.mubr.f32.gmra.mrb[0].mxu0 %v132
    %v134 = vpop.f32.mrb[0].mxu0
    %v135 = vadd.f32 0.0, %v134
    %v136 = vpop.f32.mrb[0].mxu0
    %137 = vdwg.mxu0
    %138 = vmatprep.subr.mxu0 0.0
    %v139 = vand.u32 %v42, 4294901760
    %v140 = vsub.f32 %v42, %v139
    %v141 = vand.u32 %v140, 4294901760
    %v142 = vsub.f32 %v140, %v141
    %v143 = vand.u32 %v142, 4294901760
    %144 = vmatpush1.msra.mxu0 %v143
    %145 = vmatprep.subr.mxu0 0.0
    %v146 = vand.u32 %v43, 4294901760
    %v147 = vsub.f32 %v43, %v146
    %v148 = vand.u32 %v147, 4294901760
    %v149 = vsub.f32 %v147, %v148
    %v150 = vand.u32 %v149, 4294901760
    %151 = vmatpush1.msra.mxu0 %v150
    %152 = vmatprep.subr.mxu0 0.0
    %153 = vmatpush1.msra.mxu0 0.0
    %154 = vmatprep.subr.mxu0 0.0
    %155 = vmatpush1.msra.mxu0 0.0
    %156 = vmatprep.subr.mxu0 0.0
    %157 = vmatpush1.msra.mxu0 0.0
    %158 = vmatprep.subr.mxu0 0.0
    %159 = vmatpush1.msra.mxu0 0.0
    %160 = vmatprep.subr.mxu0 0.0
    %161 = vmatpush1.msra.mxu0 0.0
    %162 = vmatprep.subr.mxu0 0.0
    %163 = vmatpush1.msra.mxu0 0.0
    %164 = vmatprep.subr.mxu0 0.0
    %165 = vmatpush1.msra.mxu0 0.0
    %166 = vmatprep.subr.mxu0 0.0
    %167 = vmatpush1.msra.mxu0 0.0
    %168 = vmatprep.subr.mxu0 0.0
    %169 = vmatpush1.msra.mxu0 0.0
    %170 = vmatprep.subr.mxu0 0.0
    %171 = vmatpush1.msra.mxu0 0.0
    %172 = vmatprep.subr.mxu0 0.0
    %173 = vmatpush1.msra.mxu0 0.0
    %174 = vmatprep.subr.mxu0 0.0
    %175 = vmatpush1.msra.mxu0 0.0
    %176 = vmatprep.subr.mxu0 0.0
    %177 = vmatpush1.msra.mxu0 0.0
    %178 = vmatprep.subr.mxu0 0.0
    %179 = vmatpush1.msra.mxu0 0.0
    %180 = vmatprep.subr.mxu0 0.0
    %181 = vmatpush1.msra.mxu0 0.0
    %182 = vmatprep.subr.mxu0 0.0
    %183 = vmatpush1.msra.mxu0 0.0
    %184 = vmatprep.subr.mxu0 0.0
    %185 = vmatpush1.msra.mxu0 0.0
    %186 = vmatprep.subr.mxu0 0.0
    %187 = vmatpush1.msra.mxu0 0.0
    %188 = vmatprep.subr.mxu0 0.0
    %189 = vmatpush1.msra.mxu0 0.0
    %190 = vmatprep.subr.mxu0 0.0
    %191 = vmatpush1.msra.mxu0 0.0
    %192 = vmatprep.subr.mxu0 0.0
    %193 = vmatpush1.msra.mxu0 0.0
    %194 = vmatprep.subr.mxu0 0.0
    %195 = vmatpush1.msra.mxu0 0.0
    %196 = vmatprep.subr.mxu0 0.0
    %197 = vmatpush1.msra.mxu0 0.0
    %198 = vmatprep.subr.mxu0 0.0
    %199 = vmatpush1.msra.mxu0 0.0
    %200 = vmatprep.subr.mxu0 0.0
    %201 = vmatpush1.msra.mxu0 0.0
    %202 = vmatprep.subr.mxu0 0.0
    %203 = vmatpush1.msra.mxu0 0.0
    %204 = vmatprep.subr.mxu0 0.0
    %205 = vmatpush1.msra.mxu0 0.0
    %206 = vmatprep.subr.mxu0 0.0
    %207 = vmatpush1.msra.mxu0 0.0
    %208 = vmatprep.subr.mxu0 0.0
    %209 = vmatpush1.msra.mxu0 0.0
    %210 = vmatprep.subr.mxu0 0.0
    %211 = vmatpush1.msra.mxu0 0.0
    %212 = vmatprep.mubr.f32.mxu0 0.0
    %v213 = vand.u32 %v46, 4294901760
    %214 = vmatmul.mubr.f32.gmra.mrb[0].mxu0 %v213
    %v215 = vpop.f32.mrb[0].mxu0
    %v216 = vadd.f32 %v125, %v215
    %v217 = vpop.f32.mrb[0].mxu0
    %218 = vmatprep.mubr.f32.mxu0 0.0
    %v219 = vand.u32 %v49, 4294901760
    %220 = vmatmul.mubr.f32.gmra.mrb[0].mxu0 %v219
    %v221 = vpop.f32.mrb[0].mxu0
    %v222 = vadd.f32 %v135, %v221
    %v223 = vpop.f32.mrb[0].mxu0
    %224 = vdwg.mxu0
    %225 = vmatprep.subr.mxu0 0.0
    %v226 = vand.u32 %v42, 4294901760
    %v227 = vsub.f32 %v42, %v226
    %228 = vmatpush1.msra.mxu0 %v227
    %229 = vmatprep.subr.mxu0 0.0
    %v230 = vand.u32 %v43, 4294901760
    %v231 = vsub.f32 %v43, %v230
    %232 = vmatpush1.msra.mxu0 %v231
    %233 = vmatprep.subr.mxu0 0.0
    %234 = vmatpush1.msra.mxu0 0.0
    %235 = vmatprep.subr.mxu0 0.0
    %236 = vmatpush1.msra.mxu0 0.0
    %237 = vmatprep.subr.mxu0 0.0
    %238 = vmatpush1.msra.mxu0 0.0
    %239 = vmatprep.subr.mxu0 0.0
    %240 = vmatpush1.msra.mxu0 0.0
    %241 = vmatprep.subr.mxu0 0.0
    %242 = vmatpush1.msra.mxu0 0.0
    %243 = vmatprep.subr.mxu0 0.0
    %244 = vmatpush1.msra.mxu0 0.0
    %245 = vmatprep.subr.mxu0 0.0
    %246 = vmatpush1.msra.mxu0 0.0
    %247 = vmatprep.subr.mxu0 0.0
    %248 = vmatpush1.msra.mxu0 0.0
    %249 = vmatprep.subr.mxu0 0.0
    %250 = vmatpush1.msra.mxu0 0.0
    %251 = vmatprep.subr.mxu0 0.0
    %252 = vmatpush1.msra.mxu0 0.0
    %253 = vmatprep.subr.mxu0 0.0
    %254 = vmatpush1.msra.mxu0 0.0
    %255 = vmatprep.subr.mxu0 0.0
    %256 = vmatpush1.msra.mxu0 0.0
    %257 = vmatprep.subr.mxu0 0.0
    %258 = vmatpush1.msra.mxu0 0.0
    %259 = vmatprep.subr.mxu0 0.0
    %260 = vmatpush1.msra.mxu0 0.0
    %261 = vmatprep.subr.mxu0 0.0
    %262 = vmatpush1.msra.mxu0 0.0
    %263 = vmatprep.subr.mxu0 0.0
    %264 = vmatpush1.msra.mxu0 0.0
    %265 = vmatprep.subr.mxu0 0.0
    %266 = vmatpush1.msra.mxu0 0.0
    %267 = vmatprep.subr.mxu0 0.0
    %268 = vmatpush1.msra.mxu0 0.0
    %269 = vmatprep.subr.mxu0 0.0
    %270 = vmatpush1.msra.mxu0 0.0
    %271 = vmatprep.subr.mxu0 0.0
    %272 = vmatpush1.msra.mxu0 0.0
    %273 = vmatprep.subr.mxu0 0.0
    %274 = vmatpush1.msra.mxu0 0.0
    %275 = vmatprep.subr.mxu0 0.0
    %276 = vmatpush1.msra.mxu0 0.0
    %277 = vmatprep.subr.mxu0 0.0
    %278 = vmatpush1.msra.mxu0 0.0
    %279 = vmatprep.subr.mxu0 0.0
    %280 = vmatpush1.msra.mxu0 0.0
    %281 = vmatprep.subr.mxu0 0.0
    %282 = vmatpush1.msra.mxu0 0.0
    %283 = vmatprep.subr.mxu0 0.0
    %284 = vmatpush1.msra.mxu0 0.0
    %285 = vmatprep.subr.mxu0 0.0
    %286 = vmatpush1.msra.mxu0 0.0
    %287 = vmatprep.subr.mxu0 0.0
    %288 = vmatpush1.msra.mxu0 0.0
    %289 = vmatprep.subr.mxu0 0.0
    %290 = vmatpush1.msra.mxu0 0.0
    %291 = vmatprep.subr.mxu0 0.0
    %292 = vmatpush1.msra.mxu0 0.0
    %293 = vmatprep.mubr.f32.mxu0 0.0
    %v294 = vand.u32 %v46, 4294901760
    %v295 = vsub.f32 %v46, %v294
    %296 = vmatmul.mubr.f32.gmra.mrb[0].mxu0 %v295
    %v297 = vpop.f32.mrb[0].mxu0
    %v298 = vadd.f32 %v216, %v297
    %v299 = vpop.f32.mrb[0].mxu0
    %300 = vmatprep.mubr.f32.mxu0 0.0
    %v301 = vand.u32 %v49, 4294901760
    %v302 = vsub.f32 %v49, %v301
    %303 = vmatmul.mubr.f32.gmra.mrb[0].mxu0 %v302
    %v304 = vpop.f32.mrb[0].mxu0
    %v305 = vadd.f32 %v222, %v304
    %v306 = vpop.f32.mrb[0].mxu0
    %307 = vdwg.mxu0
    %308 = vmatprep.subr.mxu0 0.0
    %v309 = vand.u32 %v42, 4294901760
    %310 = vmatpush1.msra.mxu0 %v309
    %311 = vmatprep.subr.mxu0 0.0
    %v312 = vand.u32 %v43, 4294901760
    %313 = vmatpush1.msra.mxu0 %v312
    %314 = vmatprep.subr.mxu0 0.0
    %315 = vmatpush1.msra.mxu0 0.0
    %316 = vmatprep.subr.mxu0 0.0
    %317 = vmatpush1.msra.mxu0 0.0
    %318 = vmatprep.subr.mxu0 0.0
    %319 = vmatpush1.msra.mxu0 0.0
    %320 = vmatprep.subr.mxu0 0.0
    %321 = vmatpush1.msra.mxu0 0.0
    %322 = vmatprep.subr.mxu0 0.0
    %323 = vmatpush1.msra.mxu0 0.0
    %324 = vmatprep.subr.mxu0 0.0
    %325 = vmatpush1.msra.mxu0 0.0
    %326 = vmatprep.subr.mxu0 0.0
    %327 = vmatpush1.msra.mxu0 0.0
    %328 = vmatprep.subr.mxu0 0.0
    %329 = vmatpush1.msra.mxu0 0.0
    %330 = vmatprep.subr.mxu0 0.0
    %331 = vmatpush1.msra.mxu0 0.0
    %332 = vmatprep.subr.mxu0 0.0
    %333 = vmatpush1.msra.mxu0 0.0
    %334 = vmatprep.subr.mxu0 0.0
    %335 = vmatpush1.msra.mxu0 0.0
    %336 = vmatprep.subr.mxu0 0.0
    %337 = vmatpush1.msra.mxu0 0.0
    %338 = vmatprep.subr.mxu0 0.0
    %339 = vmatpush1.msra.mxu0 0.0
    %340 = vmatprep.subr.mxu0 0.0
    %341 = vmatpush1.msra.mxu0 0.0
    %342 = vmatprep.subr.mxu0 0.0
    %343 = vmatpush1.msra.mxu0 0.0
    %344 = vmatprep.subr.mxu0 0.0
    %345 = vmatpush1.msra.mxu0 0.0
    %346 = vmatprep.subr.mxu0 0.0
    %347 = vmatpush1.msra.mxu0 0.0
    %348 = vmatprep.subr.mxu0 0.0
    %349 = vmatpush1.msra.mxu0 0.0
    %350 = vmatprep.subr.mxu0 0.0
    %351 = vmatpush1.msra.mxu0 0.0
    %352 = vmatprep.subr.mxu0 0.0
    %353 = vmatpush1.msra.mxu0 0.0
    %354 = vmatprep.subr.mxu0 0.0
    %355 = vmatpush1.msra.mxu0 0.0
    %356 = vmatprep.subr.mxu0 0.0
    %357 = vmatpush1.msra.mxu0 0.0
    %358 = vmatprep.subr.mxu0 0.0
    %359 = vmatpush1.msra.mxu0 0.0
    %360 = vmatprep.subr.mxu0 0.0
    %361 = vmatpush1.msra.mxu0 0.0
    %362 = vmatprep.subr.mxu0 0.0
    %363 = vmatpush1.msra.mxu0 0.0
    %364 = vmatprep.subr.mxu0 0.0
    %365 = vmatpush1.msra.mxu0 0.0
    %366 = vmatprep.subr.mxu0 0.0
    %367 = vmatpush1.msra.mxu0 0.0
    %368 = vmatprep.subr.mxu0 0.0
    %369 = vmatpush1.msra.mxu0 0.0
    %370 = vmatprep.subr.mxu0 0.0
    %371 = vmatpush1.msra.mxu0 0.0
    %372 = vmatprep.subr.mxu0 0.0
    %373 = vmatpush1.msra.mxu0 0.0
    %374 = vmatprep.mubr.f32.mxu0 0.0
    %v375 = vand.u32 %v46, 4294901760
    %v376 = vsub.f32 %v46, %v375
    %v377 = vand.u32 %v376, 4294901760
    %378 = vmatmul.mubr.f32.gmra.mrb[0].mxu0 %v377
    %v379 = vpop.f32.mrb[0].mxu0
    %v380 = vadd.f32 %v298, %v379
    %v381 = vpop.f32.mrb[0].mxu0
    %382 = vmatprep.mubr.f32.mxu0 0.0
    %v383 = vand.u32 %v49, 4294901760
    %v384 = vsub.f32 %v49, %v383
    %v385 = vand.u32 %v384, 4294901760
    %386 = vmatmul.mubr.f32.gmra.mrb[0].mxu0 %v385
    %v387 = vpop.f32.mrb[0].mxu0
    %v388 = vadd.f32 %v305, %v387
    %v389 = vpop.f32.mrb[0].mxu0
    %390 = vdwg.mxu0
    %391 = vmatprep.subr.mxu0 0.0
    %v392 = vand.u32 %v42, 4294901760
    %v393 = vsub.f32 %v42, %v392
    %v394 = vand.u32 %v393, 4294901760
    %395 = vmatpush1.msra.mxu0 %v394
    %396 = vmatprep.subr.mxu0 0.0
    %v397 = vand.u32 %v43, 4294901760
    %v398 = vsub.f32 %v43, %v397
    %v399 = vand.u32 %v398, 4294901760
    %400 = vmatpush1.msra.mxu0 %v399
    %401 = vmatprep.subr.mxu0 0.0
    %402 = vmatpush1.msra.mxu0 0.0
    %403 = vmatprep.subr.mxu0 0.0
    %404 = vmatpush1.msra.mxu0 0.0
    %405 = vmatprep.subr.mxu0 0.0
    %406 = vmatpush1.msra.mxu0 0.0
    %407 = vmatprep.subr.mxu0 0.0
    %408 = vmatpush1.msra.mxu0 0.0
    %409 = vmatprep.subr.mxu0 0.0
    %410 = vmatpush1.msra.mxu0 0.0
    %411 = vmatprep.subr.mxu0 0.0
    %412 = vmatpush1.msra.mxu0 0.0
    %413 = vmatprep.subr.mxu0 0.0
    %414 = vmatpush1.msra.mxu0 0.0
    %415 = vmatprep.subr.mxu0 0.0
    %416 = vmatpush1.msra.mxu0 0.0
    %417 = vmatprep.subr.mxu0 0.0
    %418 = vmatpush1.msra.mxu0 0.0
    %419 = vmatprep.subr.mxu0 0.0
    %420 = vmatpush1.msra.mxu0 0.0
    %421 = vmatprep.subr.mxu0 0.0
    %422 = vmatpush1.msra.mxu0 0.0
    %423 = vmatprep.subr.mxu0 0.0
    %424 = vmatpush1.msra.mxu0 0.0
    %425 = vmatprep.subr.mxu0 0.0
    %426 = vmatpush1.msra.mxu0 0.0
    %427 = vmatprep.subr.mxu0 0.0
    %428 = vmatpush1.msra.mxu0 0.0
    %429 = vmatprep.subr.mxu0 0.0
    %430 = vmatpush1.msra.mxu0 0.0
    %431 = vmatprep.subr.mxu0 0.0
    %432 = vmatpush1.msra.mxu0 0.0
    %433 = vmatprep.subr.mxu0 0.0
    %434 = vmatpush1.msra.mxu0 0.0
    %435 = vmatprep.subr.mxu0 0.0
    %436 = vmatpush1.msra.mxu0 0.0
    %437 = vmatprep.subr.mxu0 0.0
    %438 = vmatpush1.msra.mxu0 0.0
    %439 = vmatprep.subr.mxu0 0.0
    %440 = vmatpush1.msra.mxu0 0.0
    %441 = vmatprep.subr.mxu0 0.0
    %442 = vmatpush1.msra.mxu0 0.0
    %443 = vmatprep.subr.mxu0 0.0
    %444 = vmatpush1.msra.mxu0 0.0
    %445 = vmatprep.subr.mxu0 0.0
    %446 = vmatpush1.msra.mxu0 0.0
    %447 = vmatprep.subr.mxu0 0.0
    %448 = vmatpush1.msra.mxu0 0.0
    %449 = vmatprep.subr.mxu0 0.0
    %450 = vmatpush1.msra.mxu0 0.0
    %451 = vmatprep.subr.mxu0 0.0
    %452 = vmatpush1.msra.mxu0 0.0
    %453 = vmatprep.subr.mxu0 0.0
    %454 = vmatpush1.msra.mxu0 0.0
    %455 = vmatprep.subr.mxu0 0.0
    %456 = vmatpush1.msra.mxu0 0.0
    %457 = vmatprep.subr.mxu0 0.0
    %458 = vmatpush1.msra.mxu0 0.0
    %459 = vmatprep.subr.mxu0 0.0
    %460 = vmatpush1.msra.mxu0 0.0
    %461 = vmatprep.mubr.f32.mxu0 0.0
    %v462 = vand.u32 %v46, 4294901760
    %463 = vmatmul.mubr.f32.gmra.mrb[0].mxu0 %v462
    %v464 = vpop.f32.mrb[0].mxu0
    %v465 = vadd.f32 %v380, %v464
    %v466 = vpop.f32.mrb[0].mxu0
    %467 = vmatprep.mubr.f32.mxu0 0.0
    %v468 = vand.u32 %v49, 4294901760
    %469 = vmatmul.mubr.f32.gmra.mrb[0].mxu0 %v468
    %v470 = vpop.f32.mrb[0].mxu0
    %v471 = vadd.f32 %v388, %v470
    %v472 = vpop.f32.mrb[0].mxu0
    %473 = vdwg.mxu0
    %474 = vmatprep.subr.mxu0 0.0
    %v475 = vand.u32 %v42, 4294901760
    %476 = vmatpush1.msra.mxu0 %v475
    %477 = vmatprep.subr.mxu0 0.0
    %v478 = vand.u32 %v43, 4294901760
    %479 = vmatpush1.msra.mxu0 %v478
    %480 = vmatprep.subr.mxu0 0.0
    %481 = vmatpush1.msra.mxu0 0.0
    %482 = vmatprep.subr.mxu0 0.0
    %483 = vmatpush1.msra.mxu0 0.0
    %484 = vmatprep.subr.mxu0 0.0
    %485 = vmatpush1.msra.mxu0 0.0
    %486 = vmatprep.subr.mxu0 0.0
    %487 = vmatpush1.msra.mxu0 0.0
    %488 = vmatprep.subr.mxu0 0.0
    %489 = vmatpush1.msra.mxu0 0.0
    %490 = vmatprep.subr.mxu0 0.0
    %491 = vmatpush1.msra.mxu0 0.0
    %492 = vmatprep.subr.mxu0 0.0
    %493 = vmatpush1.msra.mxu0 0.0
    %494 = vmatprep.subr.mxu0 0.0
    %495 = vmatpush1.msra.mxu0 0.0
    %496 = vmatprep.subr.mxu0 0.0
    %497 = vmatpush1.msra.mxu0 0.0
    %498 = vmatprep.subr.mxu0 0.0
    %499 = vmatpush1.msra.mxu0 0.0
    %500 = vmatprep.subr.mxu0 0.0
    %501 = vmatpush1.msra.mxu0 0.0
    %502 = vmatprep.subr.mxu0 0.0
    %503 = vmatpush1.msra.mxu0 0.0
    %504 = vmatprep.subr.mxu0 0.0
    %505 = vmatpush1.msra.mxu0 0.0
    %506 = vmatprep.subr.mxu0 0.0
    %507 = vmatpush1.msra.mxu0 0.0
    %508 = vmatprep.subr.mxu0 0.0
    %509 = vmatpush1.msra.mxu0 0.0
    %510 = vmatprep.subr.mxu0 0.0
    %511 = vmatpush1.msra.mxu0 0.0
    %512 = vmatprep.subr.mxu0 0.0
    %513 = vmatpush1.msra.mxu0 0.0
    %514 = vmatprep.subr.mxu0 0.0
    %515 = vmatpush1.msra.mxu0 0.0
    %516 = vmatprep.subr.mxu0 0.0
    %517 = vmatpush1.msra.mxu0 0.0
    %518 = vmatprep.subr.mxu0 0.0
    %519 = vmatpush1.msra.mxu0 0.0
    %520 = vmatprep.subr.mxu0 0.0
    %521 = vmatpush1.msra.mxu0 0.0
    %522 = vmatprep.subr.mxu0 0.0
    %523 = vmatpush1.msra.mxu0 0.0
    %524 = vmatprep.subr.mxu0 0.0
    %525 = vmatpush1.msra.mxu0 0.0
    %526 = vmatprep.subr.mxu0 0.0
    %527 = vmatpush1.msra.mxu0 0.0
    %528 = vmatprep.subr.mxu0 0.0
    %529 = vmatpush1.msra.mxu0 0.0
    %530 = vmatprep.subr.mxu0 0.0
    %531 = vmatpush1.msra.mxu0 0.0
    %532 = vmatprep.subr.mxu0 0.0
    %533 = vmatpush1.msra.mxu0 0.0
    %534 = vmatprep.subr.mxu0 0.0
    %535 = vmatpush1.msra.mxu0 0.0
    %536 = vmatprep.subr.mxu0 0.0
    %537 = vmatpush1.msra.mxu0 0.0
    %538 = vmatprep.subr.mxu0 0.0
    %539 = vmatpush1.msra.mxu0 0.0
    %540 = vmatprep.mubr.f32.mxu0 0.0
    %v541 = vand.u32 %v46, 4294901760
    %542 = vmatmul.mubr.f32.gmra.mrb[0].mxu0 %v541
    %v543 = vpop.f32.mrb[0].mxu0
    %v544 = vadd.f32 %v465, %v543
    %v545 = vpop.f32.mrb[0].mxu0
    %546 = vmatprep.mubr.f32.mxu0 0.0
    %v547 = vand.u32 %v49, 4294901760
    %548 = vmatmul.mubr.f32.gmra.mrb[0].mxu0 %v547
    %v549 = vpop.f32.mrb[0].mxu0
    %v550 = vadd.f32 %v471, %v549
    %v551 = vpop.f32.mrb[0].mxu0
    %552 = vdwg.mxu0
    %553 = vst [vmem:[#allocation7] sm:$0xff] %v544
    %554 = vst [vmem:[#allocation7 + $0x8] sm:$0xff] %v550
    // Predicated region
    $region18: #{tpu_custom_call.1} parent=1 // pred_check
      _
    $region19: #{tpu_custom_call.1} parent=1 // pred_check_branch
      %556 = sbr.rel (0) target = $region21
    $region20: #{tpu_custom_call.1} parent=1 // pred_region
      %s558 = ssub.s32 256, 256
      %559 = vsyncadd [#allocation4], %s558
      %s560 = sshll.u32 [#allocation7], 4
      %s561 = int_to_ptr.vmem [resolvable:$true] %s560
      %566 = dma.vmem_to_hbm [thread:$0]  %s561, 256, %s2, [#allocation4], 128, 128, 8
    $region21: #{tpu_custom_call.1} parent=1 // pred_fallthru
      _
    // Predicated region
    $region22: #{tpu_custom_call.1} parent=1 // pred_check
      _
    $region23: #{tpu_custom_call.1} parent=1 // pred_check_branch
      %568 = sbr.rel (0) target = $region25
    $region24: #{tpu_custom_call.1} parent=1 // pred_region
      %569 = dma.done [#allocation4], 256
    $region25: #{tpu_custom_call.1} parent=1 // pred_fallthru
      _
    %570 = vsyncpa [#allocation3], 1
    %571 = vsyncpa [#allocation6], 1
    %572 = vsyncpa [#allocation4], 1

</llo_original>
